<compile_context>
chip_gen: v5e
topology: v5e:2x2
jax: 0.10.0
libtpu: 0.0.40
codegen_flags: <defaults>
</compile_context>

<pallas_src>
import functools

import jax
import jax.numpy as jnp
import numpy as np
from jax.experimental import pallas as pl
from jax.experimental.pallas import tpu as pltpu


def _round_up(x, m):
    return ((x + m - 1) // m) * m


def mixprop_rgcn_kernel(x_ref, w0_ref, pfirst_ref, repa_ref, pblk_ref, wrep_ref,
                        b_ref, o_ref, *, gdepth):
    """One grid step processes TB tokens (flattened (b, l) positions).

    x_ref      : (TB, NCin)            f32 token-major features
    w0_ref     : (NCin, NCout)         bf16 hop-0 weights (num_rel folded in)
    pfirst_ref : (NCin, R*NCin)        bf16 hop-1 operator (alpha residual folded in)
    repa_ref   : (NCin, R*NCin)        bf16 alpha * relation-replication operator
    pblk_ref   : (R*NCin, R*NCin)      bf16 block-diag (1-alpha)-scaled propagation
    wrep_ref   : (max(gdepth,1), R*NCin, NCout) bf16 relation-replicated hop weights
    b_ref      : (1, NCout)            f32 bias (per node, per channel)
    o_ref      : (TB, NCout)           f32 output (128-lane dense -> unmasked stores)
    """
    x = x_ref[...].astype(jnp.bfloat16)                  # (TB, NCin)

    # hop 0: FeatureAggregator('sum') of x over relations (num_rel baked into w0)
    acc = jnp.dot(x, w0_ref[...], preferred_element_type=jnp.float32)

    if gdepth >= 1:
        # hop 1: alpha*x + (1-alpha) * A_r x  for every relation, lane-stacked,
        # in a single MXU call (residual folded into the operator).
        h = jnp.dot(x, pfirst_ref[...], preferred_element_type=jnp.float32)
        # TODO(synk): nn.Dropout is stochastic; applied as identity (eval mode).
        h_bf = h.astype(jnp.bfloat16)
        acc = acc + jnp.dot(h_bf, wrep_ref[0], preferred_element_type=jnp.float32)

        if gdepth >= 2:
            # alpha * x, lane-stacked over relations — computed once per step
            ax = jnp.dot(x, repa_ref[...], preferred_element_type=jnp.float32)
            pblk = pblk_ref[...]
            for k in range(2, gdepth + 1):               # gdepth is small & static
                rg = jnp.dot(h_bf, pblk, preferred_element_type=jnp.float32)
                h = ax + rg                              # f32 elementwise residual
                h_bf = h.astype(jnp.bfloat16)
                acc = acc + jnp.dot(h_bf, wrep_ref[k - 1],
                                    preferred_element_type=jnp.float32)

    o_ref[...] = (acc + b_ref[...]).astype(o_ref.dtype)


def mixprop_rgcn(x, adj, w, b, *, gdepth, alpha, token_block=2048):
    """x: (B, c_in, N, L) NCHW; adj: (R, N, N); w: (c_out, (gdepth+1)*c_in); b: (c_out,)."""
    B, Cin, N, L = x.shape
    R = adj.shape[0]
    c_out = w.shape[0]
    K = gdepth + 1
    assert w.shape[1] == K * Cin

    f32, bf16 = jnp.float32, jnp.bfloat16
    T = B * L
    NCin = N * Cin
    NCout = N * c_out
    RNCin = R * NCin

    # ------- grid-invariant operator precompute (hoisted out of the kernel) -------
    eye_n = jnp.eye(N, dtype=f32)
    a = adj.astype(f32) + eye_n[None]                        # adj[j] + I
    a = a / jnp.sum(a, axis=2, keepdims=True)                # / row degree

    # token-major propagation operator per relation: rg_flat = h_flat @ pt_r
    #   pt_r[(w,ci),(v,cj)] = A_r[v,w] * delta(ci,cj)
    eye_c = jnp.eye(Cin, dtype=f32)
    pt = jnp.einsum('rvw,ij->rwivj', a, eye_c).reshape(R, NCin, NCin)
    pt_s = (1.0 - alpha) * pt                                # fold (1-alpha)

    # per-hop 1x1-conv weights, block-diagonal-expanded over nodes:
    #   wblk_k[(v,ci),(u,co)] = delta(v,u) * W[co, k*Cin+ci]
    w_split = jnp.transpose(w.astype(f32).reshape(c_out, K, Cin), (1, 2, 0))  # (K,Cin,Cout)
    wblk = jnp.einsum('vu,kio->kviuo', eye_n, w_split).reshape(K, NCin, NCout)

    # hop-0 weights with the relation-sum (num_rel) folded in
    w0 = (float(R) * wblk[0]).astype(bf16)                                   # (NCin, NCout)

    # relation-replication operator rep[a, s*NCin+b] = delta(a,b)
    rep = jnp.tile(jnp.eye(NCin, dtype=f32), (1, R))                         # (NCin, R*NCin)
    repa = (alpha * rep).astype(bf16)

    # hop-1 operator: x @ pfirst == stacked (alpha*x + (1-alpha)*A_r x)
    pfirst = (jnp.transpose(pt_s, (1, 0, 2)).reshape(NCin, RNCin)
              + alpha * rep).astype(bf16)                                    # (NCin, R*NCin)

    # block-diagonal all-relation propagation operator (hops >= 2)
    eye_r = jnp.eye(R, dtype=f32)
    pblk = jnp.einsum('rab,rs->rasb', pt_s, eye_r).reshape(RNCin, RNCin).astype(bf16)

    # relation-replicated per-hop weights for hops 1..gdepth
    if gdepth >= 1:
        wrep = jnp.tile(wblk[1:], (1, R, 1)).astype(bf16)                    # (gdepth, R*NCin, NCout)
    else:
        wrep = jnp.zeros((1, RNCin, NCout), dtype=bf16)                      # unused dummy

    b_flat = jnp.broadcast_to(b.astype(f32)[None, :], (N, c_out)).reshape(1, NCout)

    # lane-dense token-major input: (T, N*Cin), kept f32 for the residual path
    xk = jnp.transpose(x.astype(f32), (0, 3, 2, 1)).reshape(T, NCin)

    # ------- token tiling: multiple of 8, >=2 grid steps when possible (v7x 2 TCs) -------
    max_tile = _round_up(max(-(-T // 2), 8), 8) if T > 8 else 8
    tb = max(8, min(_round_up(int(token_block), 8), max_tile))
    T_pad = _round_up(T, tb)
    if T_pad != T:
        xk = jnp.pad(xk, ((0, T_pad - T), (0, 0)))
    grid = (T_pad // tb,)

    # VMEM budget: blocks are double-buffered by the pipeline; leave 2x headroom.
    const_bytes = ((NCin * NCout + 2 * NCin * RNCin + RNCin * RNCin
                    + wrep.shape[0] * RNCin * NCout) * 2 + NCout * 4)
    est = (2 * tb * NCin * 4           # x (double-buffered, f32)
           + 2 * tb * NCout * 4        # out (double-buffered, f32)
           + 2 * const_bytes           # grid-invariant operands
           + 8 * tb * RNCin * 4)       # live temporaries (h, ax, rg, acc, bf16 copies)
    vmem_limit = int(min(max(2 * est, 32 * 1024 * 1024), 64 * 1024 * 1024))

    kernel = functools.partial(mixprop_rgcn_kernel, gdepth=gdepth)

    out_flat = pl.pallas_call(
        kernel,
        out_shape=jax.ShapeDtypeStruct((T_pad, NCout), f32),
        grid_spec=pltpu.PrefetchScalarGridSpec(
            num_scalar_prefetch=0,
            grid=grid,
            in_specs=[
                pl.BlockSpec((tb, NCin), lambda i: (i, 0)),
                pl.BlockSpec((NCin, NCout), lambda i: (0, 0)),
                pl.BlockSpec((NCin, RNCin), lambda i: (0, 0)),
                pl.BlockSpec((NCin, RNCin), lambda i: (0, 0)),
                pl.BlockSpec((RNCin, RNCin), lambda i: (0, 0)),
                pl.BlockSpec((wrep.shape[0], RNCin, NCout), lambda i: (0, 0, 0)),
                pl.BlockSpec((1, NCout), lambda i: (0, 0)),
            ],
            out_specs=pl.BlockSpec((tb, NCout), lambda i: (i, 0)),
        ),
        compiler_params=pltpu.CompilerParams(
            dimension_semantics=("parallel",),
            vmem_limit_bytes=vmem_limit),
    )(xk, w0, pfirst, repa, pblk, wrep, b_flat)

    # (T, N*c_out) -> (B, c_out, N, L)  (back to PyTorch NCHW convention)
    out = out_flat[:T].reshape(B, L, N, c_out)
    return jnp.transpose(out, (0, 3, 2, 1))


def reference_mixprop_rgcn(x, adj, w, b, *, gdepth, alpha):
    """Pure-JAX reference mirroring the PyTorch forward (eval mode, agg='sum')."""
    R, N, _ = adj.shape
    hos = []
    for j in range(R):
        a = adj[j] + jnp.eye(N, dtype=x.dtype)
        d = a.sum(axis=1)
        a = a / d[:, None]
        h = x
        outs = [h]
        for _ in range(gdepth):
            rg = jnp.einsum('ncwl,vw->ncvl', h, a)
            h = alpha * x + (1 - alpha) * rg
            outs.append(h)
        hos.append(jnp.concatenate(outs, axis=1))
    agg = sum(hos)
    out = jnp.einsum('oc,bcnl->bonl', w, agg) + b[None, :, None, None]
    return out


if __name__ == "__main__":
    # small shapes consistent with the module's forward
    B, c_in, N, L = 2, 4, 16, 8
    gdepth, num_rel, c_out = 2, 3, 8
    alpha = 0.05
    Ct = (gdepth + 1) * c_in

    key = jax.random.PRNGKey(0)
    kx, ka, kw, kb = jax.random.split(key, 4)
    x = jax.random.normal(kx, (B, c_in, N, L), dtype=jnp.float32)
    adj = jax.random.uniform(ka, (num_rel, N, N), dtype=jnp.float32)
    # linear((gdepth+1)*c_in, c_out) == Conv2d(Ct, c_out, 1x1)
    w = jax.random.normal(kw, (c_out, Ct), dtype=jnp.float32) * 0.1
    b = jax.random.normal(kb, (c_out,), dtype=jnp.float32) * 0.1

    out = mixprop_rgcn(x, adj, w, b, gdepth=gdepth, alpha=alpha)
    out = jax.block_until_ready(out)

    ref = reference_mixprop_rgcn(x, adj, w, b, gdepth=gdepth, alpha=alpha)
    ref = jax.block_until_ready(ref)

    assert out.shape == (B, c_out, N, L), out.shape
    # bf16 MXU operands (f32 accumulation) -> relaxed tolerances vs the f32 reference
    np.testing.assert_allclose(np.asarray(out), np.asarray(ref), rtol=3e-2, atol=3e-2)

    print("KERNEL_OK")
</pallas_src>

<mosaic_0001>
module attributes {stable_mosaic.version = 11 : i64} {
  func.func @mixprop_rgcn_kernel(%arg0: i32, %arg1: memref<8x64xf32, #tpu.memory_space<vmem>>, %arg2: memref<64x128xbf16, #tpu.memory_space<vmem>>, %arg3: memref<64x192xbf16, #tpu.memory_space<vmem>>, %arg4: memref<64x192xbf16, #tpu.memory_space<vmem>>, %arg5: memref<192x192xbf16, #tpu.memory_space<vmem>>, %arg6: memref<2x192x128xbf16, #tpu.memory_space<vmem>>, %arg7: memref<1x128xf32, #tpu.memory_space<vmem>>, %arg8: memref<8x128xf32, #tpu.memory_space<vmem>>) attributes {dimension_semantics = [#tpu.dimension_semantics<parallel>], iteration_bounds = array<i64: 2>, scalar_prefetch = 0 : i64, scratch_operands = 0 : i64, tpu.core_type = #tpu.core_type<tc>, window_params = [{transform_indices = @transform_0, window_bounds = array<i64: 8, 64>}, {pipeline_mode = #tpu.pipeline_mode<synchronous>, transform_indices = @transform_1, window_bounds = array<i64: 64, 128>}, {pipeline_mode = #tpu.pipeline_mode<synchronous>, transform_indices = @transform_2, window_bounds = array<i64: 64, 192>}, {pipeline_mode = #tpu.pipeline_mode<synchronous>, transform_indices = @transform_3, window_bounds = array<i64: 64, 192>}, {pipeline_mode = #tpu.pipeline_mode<synchronous>, transform_indices = @transform_4, window_bounds = array<i64: 192, 192>}, {pipeline_mode = #tpu.pipeline_mode<synchronous>, transform_indices = @transform_5, window_bounds = array<i64: 2, 192, 128>}, {pipeline_mode = #tpu.pipeline_mode<synchronous>, transform_indices = @transform_6, window_bounds = array<i64: 1, 128>}, {transform_indices = @transform_7, window_bounds = array<i64: 8, 128>}]} {
    %c0 = arith.constant 0 : index
    %c0_0 = arith.constant 0 : index
    %0 = vector.load %arg1[%c0, %c0_0] : memref<8x64xf32, #tpu.memory_space<vmem>>, vector<8x64xf32>
    %1 = arith.truncf %0 : vector<8x64xf32> to vector<8x64xbf16>
    %c0_1 = arith.constant 0 : index
    %c0_2 = arith.constant 0 : index
    %2 = vector.load %arg2[%c0_1, %c0_2] : memref<64x128xbf16, #tpu.memory_space<vmem>>, vector<64x128xbf16>
    %cst = arith.constant dense<0.000000e+00> : vector<8x128xf32>
    %3 = tpu.matmul %1, %2, %cst {dimension_numbers = #tpu.dot_dimension_numbers<[1], [0], [0], [1], [0, 0, 1, 1], [], []>} : vector<8x64xbf16>, vector<64x128xbf16>, vector<8x128xf32> -> vector<8x128xf32>
    %c0_3 = arith.constant 0 : index
    %c0_4 = arith.constant 0 : index
    %4 = vector.load %arg3[%c0_3, %c0_4] : memref<64x192xbf16, #tpu.memory_space<vmem>>, vector<64x192xbf16>
    %cst_5 = arith.constant dense<0.000000e+00> : vector<8x192xf32>
    %5 = tpu.matmul %1, %4, %cst_5 {dimension_numbers = #tpu.dot_dimension_numbers<[1], [0], [0], [1], [0, 0, 1, 1], [], []>} : vector<8x64xbf16>, vector<64x192xbf16>, vector<8x192xf32> -> vector<8x192xf32>
    %6 = arith.truncf %5 : vector<8x192xf32> to vector<8x192xbf16>
    %c0_6 = arith.constant 0 : index
    %c0_7 = arith.constant 0 : index
    %c0_8 = arith.constant 0 : index
    %7 = vector.load %arg6[%c0_6, %c0_7, %c0_8] : memref<2x192x128xbf16, #tpu.memory_space<vmem>>, vector<1x192x128xbf16>
    %8 = vector.shape_cast %7 : vector<1x192x128xbf16> to vector<192x128xbf16>
    %cst_9 = arith.constant dense<0.000000e+00> : vector<8x128xf32>
    %9 = tpu.matmul %6, %8, %cst_9 {dimension_numbers = #tpu.dot_dimension_numbers<[1], [0], [0], [1], [0, 0, 1, 1], [], []>} : vector<8x192xbf16>, vector<192x128xbf16>, vector<8x128xf32> -> vector<8x128xf32>
    %10 = arith.addf %3, %9 : vector<8x128xf32>
    %c0_10 = arith.constant 0 : index
    %c0_11 = arith.constant 0 : index
    %11 = vector.load %arg4[%c0_10, %c0_11] : memref<64x192xbf16, #tpu.memory_space<vmem>>, vector<64x192xbf16>
    %cst_12 = arith.constant dense<0.000000e+00> : vector<8x192xf32>
    %12 = tpu.matmul %1, %11, %cst_12 {dimension_numbers = #tpu.dot_dimension_numbers<[1], [0], [0], [1], [0, 0, 1, 1], [], []>} : vector<8x64xbf16>, vector<64x192xbf16>, vector<8x192xf32> -> vector<8x192xf32>
    %c0_13 = arith.constant 0 : index
    %c0_14 = arith.constant 0 : index
    %13 = vector.load %arg5[%c0_13, %c0_14] : memref<192x192xbf16, #tpu.memory_space<vmem>>, vector<192x192xbf16>
    %cst_15 = arith.constant dense<0.000000e+00> : vector<8x192xf32>
    %14 = tpu.matmul %6, %13, %cst_15 {dimension_numbers = #tpu.dot_dimension_numbers<[1], [0], [0], [1], [0, 0, 1, 1], [], []>} : vector<8x192xbf16>, vector<192x192xbf16>, vector<8x192xf32> -> vector<8x192xf32>
    %15 = arith.addf %12, %14 : vector<8x192xf32>
    %16 = arith.truncf %15 : vector<8x192xf32> to vector<8x192xbf16>
    %c1 = arith.constant 1 : index
    %c0_16 = arith.constant 0 : index
    %c0_17 = arith.constant 0 : index
    %17 = vector.load %arg6[%c1, %c0_16, %c0_17] : memref<2x192x128xbf16, #tpu.memory_space<vmem>>, vector<1x192x128xbf16>
    %18 = vector.shape_cast %17 : vector<1x192x128xbf16> to vector<192x128xbf16>
    %cst_18 = arith.constant dense<0.000000e+00> : vector<8x128xf32>
    %19 = tpu.matmul %16, %18, %cst_18 {dimension_numbers = #tpu.dot_dimension_numbers<[1], [0], [0], [1], [0, 0, 1, 1], [], []>} : vector<8x192xbf16>, vector<192x128xbf16>, vector<8x128xf32> -> vector<8x128xf32>
    %20 = arith.addf %10, %19 : vector<8x128xf32>
    %c0_19 = arith.constant 0 : index
    %c0_20 = arith.constant 0 : index
    %21 = vector.load %arg7[%c0_19, %c0_20] : memref<1x128xf32, #tpu.memory_space<vmem>>, vector<1x128xf32>
    %22 = vector.broadcast %21 : vector<1x128xf32> to vector<8x128xf32>
    %23 = arith.addf %20, %22 : vector<8x128xf32>
    %c0_21 = arith.constant 0 : index
    %c0_22 = arith.constant 0 : index
    %24 = vector.load %arg8[%c0_21, %c0_22] : memref<8x128xf32, #tpu.memory_space<vmem>>, vector<8x128xf32>
    tpu.vector_store %arg8[%c0_21, %c0_22], %23 {strides = array<i32>} : memref<8x128xf32, #tpu.memory_space<vmem>>, vector<8x128xf32>,
    return
  }
  func.func @transform_0(%arg0: i32) -> (i32, i32) {
    %c0_i32 = arith.constant 0 : i32
    %c0_i32_0 = arith.constant 0 : i32
    return %arg0, %c0_i32 : i32, i32
  }
  func.func @transform_1(%arg0: i32) -> (i32, i32) {
    %c0_i32 = arith.constant 0 : i32
    %c0_i32_0 = arith.constant 0 : i32
    %c0_i32_1 = arith.constant 0 : i32
    return %c0_i32, %c0_i32_0 : i32, i32
  }
  func.func @transform_2(%arg0: i32) -> (i32, i32) {
    %c0_i32 = arith.constant 0 : i32
    %c0_i32_0 = arith.constant 0 : i32
    %c0_i32_1 = arith.constant 0 : i32
    return %c0_i32, %c0_i32_0 : i32, i32
  }
  func.func @transform_3(%arg0: i32) -> (i32, i32) {
    %c0_i32 = arith.constant 0 : i32
    %c0_i32_0 = arith.constant 0 : i32
    %c0_i32_1 = arith.constant 0 : i32
    return %c0_i32, %c0_i32_0 : i32, i32
  }
  func.func @transform_4(%arg0: i32) -> (i32, i32) {
    %c0_i32 = arith.constant 0 : i32
    %c0_i32_0 = arith.constant 0 : i32
    %c0_i32_1 = arith.constant 0 : i32
    return %c0_i32, %c0_i32_0 : i32, i32
  }
  func.func @transform_5(%arg0: i32) -> (i32, i32, i32) {
    %c0_i32 = arith.constant 0 : i32
    %c0_i32_0 = arith.constant 0 : i32
    %c0_i32_1 = arith.constant 0 : i32
    %c0_i32_2 = arith.constant 0 : i32
    return %c0_i32, %c0_i32_0, %c0_i32_1 : i32, i32, i32
  }
  func.func @transform_6(%arg0: i32) -> (i32, i32) {
    %c0_i32 = arith.constant 0 : i32
    %c0_i32_0 = arith.constant 0 : i32
    %c0_i32_1 = arith.constant 0 : i32
    return %c0_i32, %c0_i32_0 : i32, i32
  }
  func.func @transform_7(%arg0: i32) -> (i32, i32) {
    %c0_i32 = arith.constant 0 : i32
    %c0_i32_0 = arith.constant 0 : i32
    return %arg0, %c0_i32 : i32, i32
  }
}

</mosaic_0001>

<llo_original>
// kernel: tpu_custom_call.1
$region0: #{tpu_custom_call.1}
  #allocation0 [shape = 'u32[]', space=smem, size = 0x4, offset = 0x4, fixed_abs, tag = 'smem constant byte address 0x4 - core index']
  #allocation1 [shape = 'u32[72,128]{1,0:T(1,128)}', space=vmem, size = 0x9000, scoped, tag = 'internal scratch']
  %s0 = inlined_call_operand.hbm [shape: f32[16,64], index: 0, kind: input, shape index: {}]
  %s1 = inlined_call_operand.hbm [shape: bf16[64,128], index: 1, kind: input, shape index: {}]
  %s2 = inlined_call_operand.hbm [shape: bf16[64,192], index: 2, kind: input, shape index: {}]
  %s3 = inlined_call_operand.hbm [shape: bf16[64,192], index: 3, kind: input, shape index: {}]
  %s4 = inlined_call_operand.hbm [shape: bf16[192,192], index: 4, kind: input, shape index: {}]
  %s5 = inlined_call_operand.hbm [shape: bf16[2,192,128], index: 5, kind: input, shape index: {}]
  %s6 = inlined_call_operand.vmem [shape: f32[1,128], index: 6, kind: input, shape index: {}]
  %s7 = inlined_call_operand.hbm [shape: f32[16,128], index: 7, kind: output, shape index: {}]
  %s8 = sld [smem:[#allocation0]]
  $region85: #{tpu_custom_call.1} parent=0
    _
  %s10 = ssub.s32 1, %s8
  %s11 = scalar_select 0, %s10, %s8
  $region1: #{tpu_custom_call.1} parent=0
    #allocation2 [shape = 'u8[8192]{0}', space=vmem, size = 0x2000, scoped, tag = 'input window, operand 0']
    #allocation3 [shape = 's32[2]{0}', space=sflag, size = 0x8, scoped, tag = 'scoped memory for tpu_custom_call.1']
    #allocation4 [shape = 's32[2]{0}', space=sflag, size = 0x8, scoped, tag = 'scoped memory for tpu_custom_call.1']
    #allocation5 [shape = 'u8[16384]{0}', space=vmem, size = 0x4000, scoped, tag = 'input window, operand 1, single buffered']
    #allocation6 [shape = 's32[1]{0}', space=sflag, size = 0x4, scoped, tag = 'scoped memory for tpu_custom_call.1']
    #allocation7 [shape = 'u8[32768]{0}', space=vmem, size = 0x8000, scoped, tag = 'input window, operand 2, single buffered']
    #allocation8 [shape = 'u8[32768]{0}', space=vmem, size = 0x8000, scoped, tag = 'input window, operand 3, single buffered']
    #allocation9 [shape = 's32[1]{0}', space=sflag, size = 0x4, scoped, tag = 'scoped memory for tpu_custom_call.1']
    #allocation10 [shape = 'u8[98304]{0}', space=vmem, size = 0x18000, scoped, tag = 'input window, operand 4, single buffered']
    #allocation11 [shape = 'u8[98304]{0}', space=vmem, size = 0x18000, scoped, tag = 'input window, operand 5, single buffered']
    #allocation12 [shape = 's32[1]{0}', space=sflag, size = 0x4, scoped, tag = 'scoped memory for tpu_custom_call.1']
    #allocation13 [shape = 'u8[8192]{0}', space=vmem, size = 0x2000, scoped, tag = 'output window, operand 0']
    %12 = vsyncpa [#allocation3], 0
    %s13 = scalar_lea.sflag [#allocation3], 1
    %14 = vsyncpa %s13, 0
    %15 = vsyncpa [#allocation6], 0
    %16 = vsyncpa [#allocation9], 0
    %17 = vsyncpa [#allocation12], 0
    %18 = vsyncpa [#allocation4], 0
    %s19 = scalar_lea.sflag [#allocation4], 1
    %20 = vsyncpa %s19, 0
    loop: start=0, step=1, limit=4
    $region2: #{tpu_custom_call.1} parent=1 // loop_pre_header
      _
    $region3: #{tpu_custom_call.1} parent=1 // loop_header
      %s22 = sphi 0, %s26
      %p23 = scmp.ge.s32.totalorder %s22, 4
      %s32 = sphi 0, %s34
      %s35 = sphi 0, %s32
      %s36 = sphi 0, %s35
      %s52 = sphi 0, %s36
      %s56 = sphi 0, %s56
      %s58 = sphi 0, %s56
      %s59 = sphi 0, %s58
      %s73 = sphi 0, %s59
      %s77 = sphi 0, %s77
      %s79 = sphi 0, %s77
      %s80 = sphi 0, %s79
      %s94 = sphi 0, %s80
      %s98 = sphi 0, %s98
      %s100 = sphi 0, %s98
      %s101 = sphi 0, %s100
      %s115 = sphi 0, %s101
      %s119 = sphi 0, %s119
      %s121 = sphi 0, %s119
      %s122 = sphi 0, %s121
      %s136 = sphi 0, %s122
      %s140 = sphi 0, %s140
      %s142 = sphi 0, %s140
      %s143 = sphi 0, %s142
      %s157 = sphi 0, %s143
      %s161 = sphi 0, %s161
      %s163 = sphi 0, %s161
      %s164 = sphi 0, %s163
      %s178 = sphi 0, %s164
      %s184 = sphi 0, %s186
      %s187 = sphi 0, %s184
      %s188 = sphi 0, %s187
      %s204 = sphi 0, %s188
    $region4: #{tpu_custom_call.1} parent=1 // loop_header_branch
      %25 = sbr.rel (%p23) target = $region8
    $region5: #{tpu_custom_call.1} parent=1 // loop_body
      %s27 = ssub.s32 %s22, 1
      %s28 = ssub.s32 %s22, 2
      %s29 = sadd.s32 %s22, 1
      %s30 = ssub.s32 %s22, %s29
      %p31 = scmp.eq.s32.totalorder %s30, 0
      %s33 = sadd.s32 %s32, 1
      %s34 = scalar_select %p31, %s32, %s33
      %p37 = pneg %p31
      %p38 = scmp.eq.s32.totalorder %s22, 1
      %p39 = por %p37, %p38
      %p40 = scmp.ne.s32.totalorder %s32, %s35
      %p41 = scmp.eq.s32.totalorder %s22, 0
      %p42 = por %p40, %p41
      %p43 = scmp.ne.s32.totalorder %s32, %s35
      %p44 = scmp.eq.s32.totalorder %s27, 1
      %p45 = por %p43, %p44
      %p46 = scmp.ne.s32.totalorder %s35, %s36
      %p47 = scmp.eq.s32.totalorder %s27, 0
      %p48 = por %p46, %p47
      %p49 = scmp.ne.s32.totalorder %s35, %s36
      %p50 = scmp.eq.s32.totalorder %s28, 1
      %p51 = por %p49, %p50
      %p53 = scmp.ne.s32.totalorder %s36, %s52
      %p54 = scmp.eq.s32.totalorder %s28, 0
      %p55 = por %p53, %p54
      %s57 = sadd.s32 %s56, 1
      %p60 = scmp.eq.s32.totalorder %s22, 1
      %p61 = scmp.ne.s32.totalorder %s56, %s58
      %p62 = scmp.eq.s32.totalorder %s22, 0
      %p63 = por %p61, %p62
      %p64 = scmp.ne.s32.totalorder %s56, %s58
      %p65 = scmp.eq.s32.totalorder %s27, 1
      %p66 = por %p64, %p65
      %p67 = scmp.ne.s32.totalorder %s58, %s59
      %p68 = scmp.eq.s32.totalorder %s27, 0
      %p69 = por %p67, %p68
      %p70 = scmp.ne.s32.totalorder %s58, %s59
      %p71 = scmp.eq.s32.totalorder %s28, 1
      %p72 = por %p70, %p71
      %p74 = scmp.ne.s32.totalorder %s59, %s73
      %p75 = scmp.eq.s32.totalorder %s28, 0
      %p76 = por %p74, %p75
      %s78 = sadd.s32 %s77, 1
      %p81 = scmp.eq.s32.totalorder %s22, 1
      %p82 = scmp.ne.s32.totalorder %s77, %s79
      %p83 = scmp.eq.s32.totalorder %s22, 0
      %p84 = por %p82, %p83
      %p85 = scmp.ne.s32.totalorder %s77, %s79
      %p86 = scmp.eq.s32.totalorder %s27, 1
      %p87 = por %p85, %p86
      %p88 = scmp.ne.s32.totalorder %s79, %s80
      %p89 = scmp.eq.s32.totalorder %s27, 0
      %p90 = por %p88, %p89
      %p91 = scmp.ne.s32.totalorder %s79, %s80
      %p92 = scmp.eq.s32.totalorder %s28, 1
      %p93 = por %p91, %p92
      %p95 = scmp.ne.s32.totalorder %s80, %s94
      %p96 = scmp.eq.s32.totalorder %s28, 0
      %p97 = por %p95, %p96
      %s99 = sadd.s32 %s98, 1
      %p102 = scmp.eq.s32.totalorder %s22, 1
      %p103 = scmp.ne.s32.totalorder %s98, %s100
      %p104 = scmp.eq.s32.totalorder %s22, 0
      %p105 = por %p103, %p104
      %p106 = scmp.ne.s32.totalorder %s98, %s100
      %p107 = scmp.eq.s32.totalorder %s27, 1
      %p108 = por %p106, %p107
      %p109 = scmp.ne.s32.totalorder %s100, %s101
      %p110 = scmp.eq.s32.totalorder %s27, 0
      %p111 = por %p109, %p110
      %p112 = scmp.ne.s32.totalorder %s100, %s101
      %p113 = scmp.eq.s32.totalorder %s28, 1
      %p114 = por %p112, %p113
      %p116 = scmp.ne.s32.totalorder %s101, %s115
      %p117 = scmp.eq.s32.totalorder %s28, 0
      %p118 = por %p116, %p117
      %s120 = sadd.s32 %s119, 1
      %p123 = scmp.eq.s32.totalorder %s22, 1
      %p124 = scmp.ne.s32.totalorder %s119, %s121
      %p125 = scmp.eq.s32.totalorder %s22, 0
      %p126 = por %p124, %p125
      %p127 = scmp.ne.s32.totalorder %s119, %s121
      %p128 = scmp.eq.s32.totalorder %s27, 1
      %p129 = por %p127, %p128
      %p130 = scmp.ne.s32.totalorder %s121, %s122
      %p131 = scmp.eq.s32.totalorder %s27, 0
      %p132 = por %p130, %p131
      %p133 = scmp.ne.s32.totalorder %s121, %s122
      %p134 = scmp.eq.s32.totalorder %s28, 1
      %p135 = por %p133, %p134
      %p137 = scmp.ne.s32.totalorder %s122, %s136
      %p138 = scmp.eq.s32.totalorder %s28, 0
      %p139 = por %p137, %p138
      %s141 = sadd.s32 %s140, 1
      %p144 = scmp.eq.s32.totalorder %s22, 1
      %p145 = scmp.ne.s32.totalorder %s140, %s142
      %p146 = scmp.eq.s32.totalorder %s22, 0
      %p147 = por %p145, %p146
      %p148 = scmp.ne.s32.totalorder %s140, %s142
      %p149 = scmp.eq.s32.totalorder %s27, 1
      %p150 = por %p148, %p149
      %p151 = scmp.ne.s32.totalorder %s142, %s143
      %p152 = scmp.eq.s32.totalorder %s27, 0
      %p153 = por %p151, %p152
      %p154 = scmp.ne.s32.totalorder %s142, %s143
      %p155 = scmp.eq.s32.totalorder %s28, 1
      %p156 = por %p154, %p155
      %p158 = scmp.ne.s32.totalorder %s143, %s157
      %p159 = scmp.eq.s32.totalorder %s28, 0
      %p160 = por %p158, %p159
      %s162 = sadd.s32 %s161, 1
      %p165 = scmp.eq.s32.totalorder %s22, 1
      %p166 = scmp.ne.s32.totalorder %s161, %s163
      %p167 = scmp.eq.s32.totalorder %s22, 0
      %p168 = por %p166, %p167
      %p169 = scmp.ne.s32.totalorder %s161, %s163
      %p170 = scmp.eq.s32.totalorder %s27, 1
      %p171 = por %p169, %p170
      %p172 = scmp.ne.s32.totalorder %s163, %s164
      %p173 = scmp.eq.s32.totalorder %s27, 0
      %p174 = por %p172, %p173
      %p175 = scmp.ne.s32.totalorder %s163, %s164
      %p176 = scmp.eq.s32.totalorder %s28, 1
      %p177 = por %p175, %p176
      %p179 = scmp.ne.s32.totalorder %s164, %s178
      %p180 = scmp.eq.s32.totalorder %s28, 0
      %p181 = por %p179, %p180
      %s182 = ssub.s32 %s22, %s29
      %p183 = scmp.eq.s32.totalorder %s182, 0
      %s185 = sadd.s32 %s184, 1
      %s186 = scalar_select %p183, %s184, %s185
      %p189 = pneg %p183
      %p190 = scmp.eq.s32.totalorder %s22, 1
      %p191 = por %p189, %p190
      %p192 = scmp.ne.s32.totalorder %s184, %s187
      %p193 = scmp.eq.s32.totalorder %s22, 0
      %p194 = por %p192, %p193
      %p195 = scmp.ne.s32.totalorder %s184, %s187
      %p196 = scmp.eq.s32.totalorder %s27, 1
      %p197 = por %p195, %p196
      %p198 = scmp.ne.s32.totalorder %s187, %s188
      %p199 = scmp.eq.s32.totalorder %s27, 0
      %p200 = por %p198, %p199
      %p201 = scmp.ne.s32.totalorder %s187, %s188
      %p202 = scmp.eq.s32.totalorder %s28, 1
      %p203 = por %p201, %p202
      %p205 = scmp.ne.s32.totalorder %s188, %s204
      %p206 = scmp.eq.s32.totalorder %s28, 0
      %p207 = por %p205, %p206
      %p208 = scmp.le.s32.totalorder 1, %s22
      %p209 = scmp.lt.s32.totalorder %s22, 3
      %p210 = pnand %p208, %p209
      %p211 = pneg %p210
      // Predicated region
      $region9: #{tpu_custom_call.1} parent=5 // pred_check
        _
      $region10: #{tpu_custom_call.1} parent=5 // pred_check_branch
        %213 = sbr.rel (%p210) target = $region12
      $region11: #{tpu_custom_call.1} parent=5 // pred_region
        %s214 = ssub.s32 %s22, 1
        // Predicated region
        $region13: #{tpu_custom_call.1} parent=11 // pred_check
          %p215 = pneg %p69
        $region14: #{tpu_custom_call.1} parent=11 // pred_check_branch
          %217 = sbr.rel (%p215) target = $region16
        $region15: #{tpu_custom_call.1} parent=11 // pred_region
          %219 = vsyncadd [#allocation6], 0
          %s220 = sshll.u32 %s1, 4
          %s221 = int_to_ptr.hbm [resolvable:$true] %s220
          %s222 = sshll.u32 [#allocation5], 4
          %s223 = int_to_ptr.vmem [resolvable:$true] %s222
          %228 = dma.hbm_to_vmem [thread:$0]  %s221, 512, %s223, [#allocation6], 64, 64, 4
        $region16: #{tpu_custom_call.1} parent=11 // pred_fallthru
          _
        // Predicated region
        $region17: #{tpu_custom_call.1} parent=11 // pred_check
          %p229 = pneg %p90
        $region18: #{tpu_custom_call.1} parent=11 // pred_check_branch
          %231 = sbr.rel (%p229) target = $region20
        $region19: #{tpu_custom_call.1} parent=11 // pred_region
          %233 = vsyncadd [#allocation6], 0
          %s234 = sshll.u32 %s2, 4
          %s235 = int_to_ptr.hbm [resolvable:$true] %s234
          %s236 = sshll.u32 [#allocation7], 4
          %s237 = int_to_ptr.vmem [resolvable:$true] %s236
          %242 = dma.hbm_to_vmem [thread:$0]  %s235, 1024, %s237, [#allocation6], 128, 128, 8
        $region20: #{tpu_custom_call.1} parent=11 // pred_fallthru
          _
        // Predicated region
        $region21: #{tpu_custom_call.1} parent=11 // pred_check
          %p243 = pneg %p111
        $region22: #{tpu_custom_call.1} parent=11 // pred_check_branch
          %245 = sbr.rel (%p243) target = $region24
        $region23: #{tpu_custom_call.1} parent=11 // pred_region
          %247 = vsyncadd [#allocation9], 0
          %s248 = sshll.u32 %s3, 4
          %s249 = int_to_ptr.hbm [resolvable:$true] %s248
          %s250 = sshll.u32 [#allocation8], 4
          %s251 = int_to_ptr.vmem [resolvable:$true] %s250
          %256 = dma.hbm_to_vmem [thread:$0]  %s249, 1024, %s251, [#allocation9], 128, 128, 8
        $region24: #{tpu_custom_call.1} parent=11 // pred_fallthru
          _
        // Predicated region
        $region25: #{tpu_custom_call.1} parent=11 // pred_check
          %p257 = pneg %p132
        $region26: #{tpu_custom_call.1} parent=11 // pred_check_branch
          %259 = sbr.rel (%p257) target = $region28
        $region27: #{tpu_custom_call.1} parent=11 // pred_region
          %261 = vsyncadd [#allocation9], 0
          %s262 = sshll.u32 %s4, 4
          %s263 = int_to_ptr.hbm [resolvable:$true] %s262
          %s264 = sshll.u32 [#allocation10], 4
          %s265 = int_to_ptr.vmem [resolvable:$true] %s264
          %270 = dma.hbm_to_vmem [thread:$0]  %s263, 3072, %s265, [#allocation9], 128, 128, 8
        $region28: #{tpu_custom_call.1} parent=11 // pred_fallthru
          _
        // Predicated region
        $region29: #{tpu_custom_call.1} parent=11 // pred_check
          %p271 = pneg %p153
        $region30: #{tpu_custom_call.1} parent=11 // pred_check_branch
          %273 = sbr.rel (%p271) target = $region32
        $region31: #{tpu_custom_call.1} parent=11 // pred_region
          %275 = vsyncadd [#allocation12], 0
          %s276 = sshll.u32 %s5, 4
          %s277 = int_to_ptr.hbm [resolvable:$true] %s276
          %s278 = sshll.u32 [#allocation11], 4
          %s279 = int_to_ptr.vmem [resolvable:$true] %s278
          %284 = dma.hbm_to_vmem [thread:$0]  %s277, 3072, %s279, [#allocation12], 64, 64, 4
        $region32: #{tpu_custom_call.1} parent=11 // pred_fallthru
          _
        // Predicated region
        $region33: #{tpu_custom_call.1} parent=11 // pred_check
          %p285 = pneg %p174
        $region34: #{tpu_custom_call.1} parent=11 // pred_check_branch
          %287 = sbr.rel (%p285) target = $region36
        $region35: #{tpu_custom_call.1} parent=11 // pred_region
          _
        $region36: #{tpu_custom_call.1} parent=11 // pred_fallthru
          _
      $region12: #{tpu_custom_call.1} parent=5 // pred_fallthru
        _
      %p288 = scmp.lt.s32.totalorder %s22, 2
      // Predicated region
      $region37: #{tpu_custom_call.1} parent=5 // pred_check
        %p289 = pneg %p288
      $region38: #{tpu_custom_call.1} parent=5 // pred_check_branch
        %291 = sbr.rel (%p289) target = $region40
      $region39: #{tpu_custom_call.1} parent=5 // pred_region
        // Predicated region
        $region41: #{tpu_custom_call.1} parent=39 // pred_check
          %p292 = pneg %p42
        $region42: #{tpu_custom_call.1} parent=39 // pred_check_branch
          %294 = sbr.rel (%p292) target = $region44
        $region43: #{tpu_custom_call.1} parent=39 // pred_region
          %s295 = sand.u32 %s32, 1
          %s296 = scalar_lea.sflag [#allocation3], %s295
          %s297 = sand.u32 %s32, 1
          %s298 = smul.addr %s297, 8
          %s299 = scalar_lea.vmem [#allocation2], %s298
          %301 = vsyncadd %s296, 0
          %s302 = smul.addr %s22, 8
          %s303 = scalar_lea.hbm %s0, %s302
          %s305 = sshll.u32 %s303, 4
          %s306 = int_to_ptr.hbm [resolvable:$true] %s305
          %s307 = sshll.u32 %s299, 4
          %s308 = int_to_ptr.vmem [resolvable:$true] %s307
          %310 = dma.hbm_to_vmem [thread:$0]  %s306, 128, %s308, %s296
        $region44: #{tpu_custom_call.1} parent=39 // pred_fallthru
          _
      $region40: #{tpu_custom_call.1} parent=5 // pred_fallthru
        _
      %p311 = scmp.le.s32.totalorder 1, %s22
      %p312 = scmp.lt.s32.totalorder %s22, 3
      %p313 = pnand %p311, %p312
      %p314 = pneg %p313
      // Predicated region
      $region45: #{tpu_custom_call.1} parent=5 // pred_check
        _
      $region46: #{tpu_custom_call.1} parent=5 // pred_check_branch
        %316 = sbr.rel (%p313) target = $region48
      $region47: #{tpu_custom_call.1} parent=5 // pred_region
        %s317 = ssub.s32 %s22, 1
        %s318 = sand.u32 %s35, 1
        %s319 = scalar_lea.sflag [#allocation3], %s318
        %s320 = sand.u32 %s35, 1
        %s321 = smul.addr %s320, 8
        %s322 = scalar_lea.vmem [#allocation2], %s321
        // Predicated region
        $region49: #{tpu_custom_call.1} parent=47 // pred_check
          %p323 = pneg %p48
        $region50: #{tpu_custom_call.1} parent=47 // pred_check_branch
          %325 = sbr.rel (%p323) target = $region52
        $region51: #{tpu_custom_call.1} parent=47 // pred_region
          %327 = dma.done %s319, 128
        $region52: #{tpu_custom_call.1} parent=47 // pred_fallthru
          _
        // Predicated region
        $region53: #{tpu_custom_call.1} parent=47 // pred_check
          %p328 = pneg %p69
        $region54: #{tpu_custom_call.1} parent=47 // pred_check_branch
          %330 = sbr.rel (%p328) target = $region56
        $region55: #{tpu_custom_call.1} parent=47 // pred_region
          %332 = dma.done [#allocation6], 512
        $region56: #{tpu_custom_call.1} parent=47 // pred_fallthru
          _
        // Predicated region
        $region57: #{tpu_custom_call.1} parent=47 // pred_check
          %p333 = pneg %p90
        $region58: #{tpu_custom_call.1} parent=47 // pred_check_branch
          %335 = sbr.rel (%p333) target = $region60
        $region59: #{tpu_custom_call.1} parent=47 // pred_region
          %337 = dma.done [#allocation6], 1024
        $region60: #{tpu_custom_call.1} parent=47 // pred_fallthru
          _
        // Predicated region
        $region61: #{tpu_custom_call.1} parent=47 // pred_check
          %p338 = pneg %p111
        $region62: #{tpu_custom_call.1} parent=47 // pred_check_branch
          %340 = sbr.rel (%p338) target = $region64
        $region63: #{tpu_custom_call.1} parent=47 // pred_region
          %342 = dma.done [#allocation9], 1024
        $region64: #{tpu_custom_call.1} parent=47 // pred_fallthru
          _
        // Predicated region
        $region65: #{tpu_custom_call.1} parent=47 // pred_check
          %p343 = pneg %p132
        $region66: #{tpu_custom_call.1} parent=47 // pred_check_branch
          %345 = sbr.rel (%p343) target = $region68
        $region67: #{tpu_custom_call.1} parent=47 // pred_region
          %347 = dma.done [#allocation9], 3072
        $region68: #{tpu_custom_call.1} parent=47 // pred_fallthru
          _
        // Predicated region
        $region69: #{tpu_custom_call.1} parent=47 // pred_check
          %p348 = pneg %p153
        $region70: #{tpu_custom_call.1} parent=47 // pred_check_branch
          %350 = sbr.rel (%p348) target = $region72
        $region71: #{tpu_custom_call.1} parent=47 // pred_region
          %352 = dma.done [#allocation12], 3072
        $region72: #{tpu_custom_call.1} parent=47 // pred_fallthru
          _
        %s353 = sand.u32 %s35, 1
        %s354 = scalar_lea.sflag [#allocation3], %s353
        %s355 = sand.u32 %s35, 1
        %s356 = smul.addr %s355, 8
        %s357 = scalar_lea.vmem [#allocation2], %s356
        %p358 = pneg %p48
        %p359 = pneg %p45
        %p360 = pneg %p69
        %p361 = pneg %p66
        %p362 = pneg %p90
        %p363 = pneg %p87
        %p364 = pneg %p111
        %p365 = pneg %p108
        %p366 = pneg %p132
        %p367 = pneg %p129
        %p368 = pneg %p153
        %p369 = pneg %p150
        %p370 = pneg %p174
        %p371 = pneg %p171
        %p372 = pneg %p200
        %p373 = pneg %p197
        %s374 = sand.u32 %s187, 1
        %s375 = scalar_lea.sflag [#allocation4], %s374
        %s376 = sand.u32 %s187, 1
        %s377 = smul.addr %s376, 8
        %s378 = scalar_lea.vmem [#allocation13], %s377
        %v380 = vld [vmem:[%s322] sm:$0xff]
        %v381 = vpack.c.bf16 %v380, %v380
        %v382 = vld [vmem:[#allocation5] sm:$0xf]
        %v383 = vld [vmem:[#allocation5 + $0x4] sm:$0xf]
        %v384 = vld [vmem:[#allocation5 + $0x8] sm:$0xf]
        %v385 = vld [vmem:[#allocation5 + $0xc] sm:$0xf]
        %v386 = vld [vmem:[#allocation5 + $0x10] sm:$0xf]
        %v387 = vld [vmem:[#allocation5 + $0x14] sm:$0xf]
        %v388 = vld [vmem:[#allocation5 + $0x18] sm:$0xf]
        %v389 = vld [vmem:[#allocation5 + $0x1c] sm:$0xf]
        %v390 = vld [vmem:[#allocation7] sm:$0xff]
        %v391 = vld [vmem:[#allocation7 + $0x8] sm:$0xff]
        %v392 = vld [vmem:[#allocation7 + $0x10] sm:$0xff]
        %v393 = vld [vmem:[#allocation7 + $0x18] sm:$0xff]
        %v394 = vld [vmem:[#allocation7 + $0x20] sm:$0xff]
        %v395 = vld [vmem:[#allocation7 + $0x28] sm:$0xff]
        %v396 = vld [vmem:[#allocation7 + $0x30] sm:$0xff]
        %v397 = vld [vmem:[#allocation7 + $0x38] sm:$0xff]
        %v406 = vunpack.c.l.b16 %v390
        %v407 = vunpack.c.h.b16 %v390
        %v408 = vunpack.c.l.b16 %v391
        %v409 = vunpack.c.h.b16 %v391
        %v410 = vunpack.c.l.b16 %v392
        %v411 = vunpack.c.h.b16 %v392
        %v412 = vunpack.c.l.b16 %v393
        %v413 = vunpack.c.h.b16 %v393
        %v414 = vunpack.c.l.b16 %v394
        %v415 = vunpack.c.h.b16 %v394
        %v416 = vunpack.c.l.b16 %v395
        %v417 = vunpack.c.h.b16 %v395
        %v418 = vunpack.c.l.b16 %v396
        %v419 = vunpack.c.h.b16 %v396
        %v420 = vunpack.c.l.b16 %v397
        %v421 = vunpack.c.h.b16 %v397
        %v422 = vpack.c.b16 %v408, %v406
        %v423 = vpack.c.b16 %v409, %v407
        %v424 = vpack.c.b16 %v412, %v410
        %v425 = vpack.c.b16 %v413, %v411
        %v426 = vpack.c.b16 %v416, %v414
        %v427 = vpack.c.b16 %v417, %v415
        %v428 = vpack.c.b16 %v420, %v418
        %v429 = vpack.c.b16 %v421, %v419
        %vm438 = vcmask 523264
        %v440 = vsel %vm438, %v381, 0
        %442 = vmatpush.bf16.msra.mxu0 0
        %443 = vmatpush.bf16.msra.mxu0 0
        %444 = vmatpush.bf16.msra.mxu0 0
        %445 = vmatpush.bf16.msra.mxu0 0
        %446 = vmatpush.bf16.msra.mxu0 %v428
        %447 = vmatpush.bf16.msra.mxu0 %v426
        %448 = vmatpush.bf16.msra.mxu0 %v424
        %449 = vmatpush.bf16.msra.mxu0 %v422
        %450 = vmatmul.bf16.gmra.mxu0 %v440
        %v451 = vpop.f32.mrf.mxu0
        %v452 = vadd.f32 0.0, %v451
        %v453 = vpop.f32.mrf.mxu0
        %454 = vdwg.mxu0
        %455 = vmatpush.bf16.msra.mxu0 0
        %456 = vmatpush.bf16.msra.mxu0 0
        %457 = vmatpush.bf16.msra.mxu0 0
        %458 = vmatpush.bf16.msra.mxu0 0
        %459 = vmatpush.bf16.msra.mxu0 %v429
        %460 = vmatpush.bf16.msra.mxu0 %v427
        %461 = vmatpush.bf16.msra.mxu0 %v425
        %462 = vmatpush.bf16.msra.mxu0 %v423
        %463 = vmatmul.bf16.gmra.mxu0 %v440
        %v464 = vpop.f32.mrf.mxu0
        %v465 = vadd.f32 0.0, %v464
        %v466 = vpop.f32.mrf.mxu0
        %467 = vdwg.mxu0
        %v468 = vpack.c.bf16 %v452, %v452
        %v469 = vpack.c.bf16 %v465, %v465
        %v470 = vld [vmem:[#allocation11] sm:$0xf]
        %v471 = vld [vmem:[#allocation11 + $0x4] sm:$0xf]
        %v472 = vld [vmem:[#allocation11 + $0x8] sm:$0xf]
        %v473 = vld [vmem:[#allocation11 + $0xc] sm:$0xf]
        %v474 = vld [vmem:[#allocation11 + $0x10] sm:$0xf]
        %v475 = vld [vmem:[#allocation11 + $0x14] sm:$0xf]
        %v476 = vld [vmem:[#allocation11 + $0x18] sm:$0xf]
        %v477 = vld [vmem:[#allocation11 + $0x1c] sm:$0xf]
        %v478 = vld [vmem:[#allocation11 + $0x20] sm:$0xf]
        %v479 = vld [vmem:[#allocation11 + $0x24] sm:$0xf]
        %v480 = vld [vmem:[#allocation11 + $0x28] sm:$0xf]
        %v481 = vld [vmem:[#allocation11 + $0x2c] sm:$0xf]
        %v482 = vld [vmem:[#allocation11 + $0x30] sm:$0xf]
        %v483 = vld [vmem:[#allocation11 + $0x34] sm:$0xf]
        %v484 = vld [vmem:[#allocation11 + $0x38] sm:$0xf]
        %v485 = vld [vmem:[#allocation11 + $0x3c] sm:$0xf]
        %v486 = vld [vmem:[#allocation11 + $0x40] sm:$0xf]
        %v487 = vld [vmem:[#allocation11 + $0x44] sm:$0xf]
        %v488 = vld [vmem:[#allocation11 + $0x48] sm:$0xf]
        %v489 = vld [vmem:[#allocation11 + $0x4c] sm:$0xf]
        %v490 = vld [vmem:[#allocation11 + $0x50] sm:$0xf]
        %v491 = vld [vmem:[#allocation11 + $0x54] sm:$0xf]
        %v492 = vld [vmem:[#allocation11 + $0x58] sm:$0xf]
        %v493 = vld [vmem:[#allocation11 + $0x5c] sm:$0xf]
        %v518 = vunpack.c.l.b16 %v470
        %v519 = vunpack.c.l.b16 %v471
        %v520 = vunpack.c.l.b16 %v472
        %v521 = vunpack.c.l.b16 %v473
        %v522 = vunpack.c.l.b16 %v474
        %v523 = vunpack.c.l.b16 %v475
        %v524 = vunpack.c.l.b16 %v476
        %v525 = vunpack.c.l.b16 %v477
        %v526 = vunpack.c.l.b16 %v478
        %v527 = vunpack.c.l.b16 %v479
        %v528 = vunpack.c.l.b16 %v480
        %v529 = vunpack.c.l.b16 %v481
        %v530 = vunpack.c.l.b16 %v482
        %v531 = vunpack.c.l.b16 %v483
        %v532 = vunpack.c.l.b16 %v484
        %v533 = vunpack.c.l.b16 %v485
        %v534 = vunpack.c.l.b16 %v486
        %v535 = vunpack.c.l.b16 %v487
        %v536 = vunpack.c.l.b16 %v488
        %v537 = vunpack.c.l.b16 %v489
        %v538 = vunpack.c.l.b16 %v490
        %v539 = vunpack.c.l.b16 %v491
        %v540 = vunpack.c.l.b16 %v492
        %v541 = vunpack.c.l.b16 %v493
        %v542 = vpack.c.b16 %v519, %v518
        %v543 = vpack.c.b16 %v521, %v520
        %v544 = vpack.c.b16 %v523, %v522
        %v545 = vpack.c.b16 %v525, %v524
        %v546 = vpack.c.b16 %v527, %v526
        %v547 = vpack.c.b16 %v529, %v528
        %v548 = vpack.c.b16 %v531, %v530
        %v549 = vpack.c.b16 %v533, %v532
        %v550 = vpack.c.b16 %v535, %v534
        %v551 = vpack.c.b16 %v537, %v536
        %v552 = vpack.c.b16 %v539, %v538
        %v553 = vpack.c.b16 %v541, %v540
        %v567 = vsel %vm438, %v469, 0
        %569 = vmatpush.bf16.msra.mxu0 %v549
        %570 = vmatpush.bf16.msra.mxu0 %v548
        %571 = vmatpush.bf16.msra.mxu0 %v547
        %572 = vmatpush.bf16.msra.mxu0 %v546
        %573 = vmatpush.bf16.msra.mxu0 %v545
        %574 = vmatpush.bf16.msra.mxu0 %v544
        %575 = vmatpush.bf16.msra.mxu0 %v543
        %576 = vmatpush.bf16.msra.mxu0 %v542
        %577 = vmatmul.bf16.gmra.mxu0 %v468
        %v578 = vpop.f32.mrf.mxu0
        %v579 = vadd.f32 0.0, %v578
        %v580 = vpop.f32.mrf.mxu0
        %581 = vdwg.mxu0
        %582 = vmatpush.bf16.msra.mxu0 0
        %583 = vmatpush.bf16.msra.mxu0 0
        %584 = vmatpush.bf16.msra.mxu0 0
        %585 = vmatpush.bf16.msra.mxu0 0
        %586 = vmatpush.bf16.msra.mxu0 %v553
        %587 = vmatpush.bf16.msra.mxu0 %v552
        %588 = vmatpush.bf16.msra.mxu0 %v551
        %589 = vmatpush.bf16.msra.mxu0 %v550
        %590 = vmatmul.bf16.gmra.mxu0 %v567
        %v591 = vpop.f32.mrf.mxu0
        %v592 = vadd.f32 %v579, %v591
        %v593 = vpop.f32.mrf.mxu0
        %594 = vdwg.mxu0
        %v603 = vunpack.c.l.b16 %v382
        %v604 = vunpack.c.l.b16 %v383
        %v605 = vunpack.c.l.b16 %v384
        %v606 = vunpack.c.l.b16 %v385
        %v607 = vunpack.c.l.b16 %v386
        %v608 = vunpack.c.l.b16 %v387
        %v609 = vunpack.c.l.b16 %v388
        %v610 = vunpack.c.l.b16 %v389
        %v611 = vpack.c.b16 %v604, %v603
        %v612 = vpack.c.b16 %v606, %v605
        %v613 = vpack.c.b16 %v608, %v607
        %v614 = vpack.c.b16 %v610, %v609
        %619 = vmatpush.bf16.msra.mxu0 0
        %620 = vmatpush.bf16.msra.mxu0 0
        %621 = vmatpush.bf16.msra.mxu0 0
        %622 = vmatpush.bf16.msra.mxu0 0
        %623 = vmatpush.bf16.msra.mxu0 %v614
        %624 = vmatpush.bf16.msra.mxu0 %v613
        %625 = vmatpush.bf16.msra.mxu0 %v612
        %626 = vmatpush.bf16.msra.mxu0 %v611
        %627 = vmatmul.bf16.gmra.mxu0 %v440
        %v628 = vpop.f32.mrf.mxu0
        %v629 = vadd.f32 %v592, %v628
        %v630 = vpop.f32.mrf.mxu0
        %631 = vdwg.mxu0
        %v632 = vld [vmem:[#allocation8] sm:$0xff]
        %v633 = vld [vmem:[#allocation8 + $0x8] sm:$0xff]
        %v634 = vld [vmem:[#allocation8 + $0x10] sm:$0xff]
        %v635 = vld [vmem:[#allocation8 + $0x18] sm:$0xff]
        %v636 = vld [vmem:[#allocation8 + $0x20] sm:$0xff]
        %v637 = vld [vmem:[#allocation8 + $0x28] sm:$0xff]
        %v638 = vld [vmem:[#allocation8 + $0x30] sm:$0xff]
        %v639 = vld [vmem:[#allocation8 + $0x38] sm:$0xff]
        %v640 = vld [vmem:[#allocation10] sm:$0xff]
        %v641 = vld [vmem:[#allocation10 + $0x8] sm:$0xff]
        %v642 = vld [vmem:[#allocation10 + $0x10] sm:$0xff]
        %v643 = vld [vmem:[#allocation10 + $0x18] sm:$0xff]
        %v644 = vld [vmem:[#allocation10 + $0x20] sm:$0xff]
        %v645 = vld [vmem:[#allocation10 + $0x28] sm:$0xff]
        %v646 = vld [vmem:[#allocation10 + $0x30] sm:$0xff]
        %v647 = vld [vmem:[#allocation10 + $0x38] sm:$0xff]
        %v648 = vld [vmem:[#allocation10 + $0x40] sm:$0xff]
        %v649 = vld [vmem:[#allocation10 + $0x48] sm:$0xff]
        %v650 = vld [vmem:[#allocation10 + $0x50] sm:$0xff]
        %v651 = vld [vmem:[#allocation10 + $0x58] sm:$0xff]
        %v652 = vld [vmem:[#allocation10 + $0x60] sm:$0xff]
        %v653 = vld [vmem:[#allocation10 + $0x68] sm:$0xff]
        %v654 = vld [vmem:[#allocation10 + $0x70] sm:$0xff]
        %v655 = vld [vmem:[#allocation10 + $0x78] sm:$0xff]
        %v656 = vld [vmem:[#allocation10 + $0x80] sm:$0xff]
        %v657 = vld [vmem:[#allocation10 + $0x88] sm:$0xff]
        %v658 = vld [vmem:[#allocation10 + $0x90] sm:$0xff]
        %v659 = vld [vmem:[#allocation10 + $0x98] sm:$0xff]
        %v660 = vld [vmem:[#allocation10 + $0xa0] sm:$0xff]
        %v661 = vld [vmem:[#allocation10 + $0xa8] sm:$0xff]
        %v662 = vld [vmem:[#allocation10 + $0xb0] sm:$0xff]
        %v663 = vld [vmem:[#allocation10 + $0xb8] sm:$0xff]
        %v688 = vunpack.c.l.b16 %v640
        %v689 = vunpack.c.h.b16 %v640
        %v690 = vunpack.c.l.b16 %v641
        %v691 = vunpack.c.h.b16 %v641
        %v692 = vunpack.c.l.b16 %v642
        %v693 = vunpack.c.h.b16 %v642
        %v694 = vunpack.c.l.b16 %v643
        %v695 = vunpack.c.h.b16 %v643
        %v696 = vunpack.c.l.b16 %v644
        %v697 = vunpack.c.h.b16 %v644
        %v698 = vunpack.c.l.b16 %v645
        %v699 = vunpack.c.h.b16 %v645
        %v700 = vunpack.c.l.b16 %v646
        %v701 = vunpack.c.h.b16 %v646
        %v702 = vunpack.c.l.b16 %v647
        %v703 = vunpack.c.h.b16 %v647
        %v704 = vunpack.c.l.b16 %v648
        %v705 = vunpack.c.h.b16 %v648
        %v706 = vunpack.c.l.b16 %v649
        %v707 = vunpack.c.h.b16 %v649
        %v708 = vunpack.c.l.b16 %v650
        %v709 = vunpack.c.h.b16 %v650
        %v710 = vunpack.c.l.b16 %v651
        %v711 = vunpack.c.h.b16 %v651
        %v712 = vunpack.c.l.b16 %v652
        %v713 = vunpack.c.h.b16 %v652
        %v714 = vunpack.c.l.b16 %v653
        %v715 = vunpack.c.h.b16 %v653
        %v716 = vunpack.c.l.b16 %v654
        %v717 = vunpack.c.h.b16 %v654
        %v718 = vunpack.c.l.b16 %v655
        %v719 = vunpack.c.h.b16 %v655
        %v720 = vunpack.c.l.b16 %v656
        %v721 = vunpack.c.h.b16 %v656
        %v722 = vunpack.c.l.b16 %v657
        %v723 = vunpack.c.h.b16 %v657
        %v724 = vunpack.c.l.b16 %v658
        %v725 = vunpack.c.h.b16 %v658
        %v726 = vunpack.c.l.b16 %v659
        %v727 = vunpack.c.h.b16 %v659
        %v728 = vunpack.c.l.b16 %v660
        %v729 = vunpack.c.h.b16 %v660
        %v730 = vunpack.c.l.b16 %v661
        %v731 = vunpack.c.h.b16 %v661
        %v732 = vunpack.c.l.b16 %v662
        %v733 = vunpack.c.h.b16 %v662
        %v734 = vunpack.c.l.b16 %v663
        %v735 = vunpack.c.h.b16 %v663
        %v736 = vpack.c.b16 %v690, %v688
        %v737 = vpack.c.b16 %v691, %v689
        %v738 = vpack.c.b16 %v694, %v692
        %v739 = vpack.c.b16 %v695, %v693
        %v740 = vpack.c.b16 %v698, %v696
        %v741 = vpack.c.b16 %v699, %v697
        %v742 = vpack.c.b16 %v702, %v700
        %v743 = vpack.c.b16 %v703, %v701
        %v744 = vpack.c.b16 %v706, %v704
        %v745 = vpack.c.b16 %v707, %v705
        %v746 = vpack.c.b16 %v710, %v708
        %v747 = vpack.c.b16 %v711, %v709
        %v748 = vpack.c.b16 %v714, %v712
        %v749 = vpack.c.b16 %v715, %v713
        %v750 = vpack.c.b16 %v718, %v716
        %v751 = vpack.c.b16 %v719, %v717
        %v752 = vpack.c.b16 %v722, %v720
        %v753 = vpack.c.b16 %v723, %v721
        %v754 = vpack.c.b16 %v726, %v724
        %v755 = vpack.c.b16 %v727, %v725
        %v756 = vpack.c.b16 %v730, %v728
        %v757 = vpack.c.b16 %v731, %v729
        %v758 = vpack.c.b16 %v734, %v732
        %v759 = vpack.c.b16 %v735, %v733
        %784 = vmatpush.bf16.msra.mxu0 %v750
        %785 = vmatpush.bf16.msra.mxu0 %v748
        %786 = vmatpush.bf16.msra.mxu0 %v746
        %787 = vmatpush.bf16.msra.mxu0 %v744
        %788 = vmatpush.bf16.msra.mxu0 %v742
        %789 = vmatpush.bf16.msra.mxu0 %v740
        %790 = vmatpush.bf16.msra.mxu0 %v738
        %791 = vmatpush.bf16.msra.mxu0 %v736
        %792 = vmatmul.bf16.gmra.mxu0 %v468
        %v793 = vpop.f32.mrf.mxu0
        %v794 = vadd.f32 0.0, %v793
        %v795 = vpop.f32.mrf.mxu0
        %796 = vdwg.mxu0
        %797 = vmatpush.bf16.msra.mxu0 0
        %798 = vmatpush.bf16.msra.mxu0 0
        %799 = vmatpush.bf16.msra.mxu0 0
        %800 = vmatpush.bf16.msra.mxu0 0
        %801 = vmatpush.bf16.msra.mxu0 %v758
        %802 = vmatpush.bf16.msra.mxu0 %v756
        %803 = vmatpush.bf16.msra.mxu0 %v754
        %804 = vmatpush.bf16.msra.mxu0 %v752
        %805 = vmatmul.bf16.gmra.mxu0 %v567
        %v806 = vpop.f32.mrf.mxu0
        %v807 = vadd.f32 %v794, %v806
        %v808 = vpop.f32.mrf.mxu0
        %809 = vdwg.mxu0
        %810 = vmatpush.bf16.msra.mxu0 %v751
        %811 = vmatpush.bf16.msra.mxu0 %v749
        %812 = vmatpush.bf16.msra.mxu0 %v747
        %813 = vmatpush.bf16.msra.mxu0 %v745
        %814 = vmatpush.bf16.msra.mxu0 %v743
        %815 = vmatpush.bf16.msra.mxu0 %v741
        %816 = vmatpush.bf16.msra.mxu0 %v739
        %817 = vmatpush.bf16.msra.mxu0 %v737
        %818 = vmatmul.bf16.gmra.mxu0 %v468
        %v819 = vpop.f32.mrf.mxu0
        %v820 = vadd.f32 0.0, %v819
        %v821 = vpop.f32.mrf.mxu0
        %822 = vdwg.mxu0
        %823 = vmatpush.bf16.msra.mxu0 0
        %824 = vmatpush.bf16.msra.mxu0 0
        %825 = vmatpush.bf16.msra.mxu0 0
        %826 = vmatpush.bf16.msra.mxu0 0
        %827 = vmatpush.bf16.msra.mxu0 %v759
        %828 = vmatpush.bf16.msra.mxu0 %v757
        %829 = vmatpush.bf16.msra.mxu0 %v755
        %830 = vmatpush.bf16.msra.mxu0 %v753
        %831 = vmatmul.bf16.gmra.mxu0 %v567
        %v832 = vpop.f32.mrf.mxu0
        %v833 = vadd.f32 %v820, %v832
        %v834 = vpop.f32.mrf.mxu0
        %835 = vdwg.mxu0
        %v844 = vunpack.c.l.b16 %v632
        %v845 = vunpack.c.h.b16 %v632
        %v846 = vunpack.c.l.b16 %v633
        %v847 = vunpack.c.h.b16 %v633
        %v848 = vunpack.c.l.b16 %v634
        %v849 = vunpack.c.h.b16 %v634
        %v850 = vunpack.c.l.b16 %v635
        %v851 = vunpack.c.h.b16 %v635
        %v852 = vunpack.c.l.b16 %v636
        %v853 = vunpack.c.h.b16 %v636
        %v854 = vunpack.c.l.b16 %v637
        %v855 = vunpack.c.h.b16 %v637
        %v856 = vunpack.c.l.b16 %v638
        %v857 = vunpack.c.h.b16 %v638
        %v858 = vunpack.c.l.b16 %v639
        %v859 = vunpack.c.h.b16 %v639
        %v860 = vpack.c.b16 %v846, %v844
        %v861 = vpack.c.b16 %v847, %v845
        %v862 = vpack.c.b16 %v850, %v848
        %v863 = vpack.c.b16 %v851, %v849
        %v864 = vpack.c.b16 %v854, %v852
        %v865 = vpack.c.b16 %v855, %v853
        %v866 = vpack.c.b16 %v858, %v856
        %v867 = vpack.c.b16 %v859, %v857
        %876 = vmatpush.bf16.msra.mxu0 0
        %877 = vmatpush.bf16.msra.mxu0 0
        %878 = vmatpush.bf16.msra.mxu0 0
        %879 = vmatpush.bf16.msra.mxu0 0
        %880 = vmatpush.bf16.msra.mxu0 %v866
        %881 = vmatpush.bf16.msra.mxu0 %v864
        %882 = vmatpush.bf16.msra.mxu0 %v862
        %883 = vmatpush.bf16.msra.mxu0 %v860
        %884 = vmatmul.bf16.gmra.mxu0 %v440
        %v885 = vpop.f32.mrf.mxu0
        %v886 = vadd.f32 %v807, %v885
        %v887 = vpop.f32.mrf.mxu0
        %888 = vdwg.mxu0
        %889 = vmatpush.bf16.msra.mxu0 0
        %890 = vmatpush.bf16.msra.mxu0 0
        %891 = vmatpush.bf16.msra.mxu0 0
        %892 = vmatpush.bf16.msra.mxu0 0
        %893 = vmatpush.bf16.msra.mxu0 %v867
        %894 = vmatpush.bf16.msra.mxu0 %v865
        %895 = vmatpush.bf16.msra.mxu0 %v863
        %896 = vmatpush.bf16.msra.mxu0 %v861
        %897 = vmatmul.bf16.gmra.mxu0 %v440
        %v898 = vpop.f32.mrf.mxu0
        %v899 = vadd.f32 %v833, %v898
        %v900 = vpop.f32.mrf.mxu0
        %901 = vdwg.mxu0
        %v902 = vpack.c.bf16 %v886, %v886
        %v903 = vpack.c.bf16 %v899, %v899
        %s904 = scalar_lea.vmem [#allocation11], 96
        %v905 = vld [vmem:[%s904] sm:$0xf]
        %v906 = vld [vmem:[%s904 + $0x4] sm:$0xf]
        %v907 = vld [vmem:[%s904 + $0x8] sm:$0xf]
        %v908 = vld [vmem:[%s904 + $0xc] sm:$0xf]
        %v909 = vld [vmem:[%s904 + $0x10] sm:$0xf]
        %v910 = vld [vmem:[%s904 + $0x14] sm:$0xf]
        %v911 = vld [vmem:[%s904 + $0x18] sm:$0xf]
        %v912 = vld [vmem:[%s904 + $0x1c] sm:$0xf]
        %v913 = vld [vmem:[%s904 + $0x20] sm:$0xf]
        %v914 = vld [vmem:[%s904 + $0x24] sm:$0xf]
        %v915 = vld [vmem:[%s904 + $0x28] sm:$0xf]
        %v916 = vld [vmem:[%s904 + $0x2c] sm:$0xf]
        %v917 = vld [vmem:[%s904 + $0x30] sm:$0xf]
        %v918 = vld [vmem:[%s904 + $0x34] sm:$0xf]
        %v919 = vld [vmem:[%s904 + $0x38] sm:$0xf]
        %v920 = vld [vmem:[%s904 + $0x3c] sm:$0xf]
        %v921 = vld [vmem:[%s904 + $0x40] sm:$0xf]
        %v922 = vld [vmem:[%s904 + $0x44] sm:$0xf]
        %v923 = vld [vmem:[%s904 + $0x48] sm:$0xf]
        %v924 = vld [vmem:[%s904 + $0x4c] sm:$0xf]
        %v925 = vld [vmem:[%s904 + $0x50] sm:$0xf]
        %v926 = vld [vmem:[%s904 + $0x54] sm:$0xf]
        %v927 = vld [vmem:[%s904 + $0x58] sm:$0xf]
        %v928 = vld [vmem:[%s904 + $0x5c] sm:$0xf]
        %v953 = vunpack.c.l.b16 %v905
        %v954 = vunpack.c.l.b16 %v906
        %v955 = vunpack.c.l.b16 %v907
        %v956 = vunpack.c.l.b16 %v908
        %v957 = vunpack.c.l.b16 %v909
        %v958 = vunpack.c.l.b16 %v910
        %v959 = vunpack.c.l.b16 %v911
        %v960 = vunpack.c.l.b16 %v912
        %v961 = vunpack.c.l.b16 %v913
        %v962 = vunpack.c.l.b16 %v914
        %v963 = vunpack.c.l.b16 %v915
        %v964 = vunpack.c.l.b16 %v916
        %v965 = vunpack.c.l.b16 %v917
        %v966 = vunpack.c.l.b16 %v918
        %v967 = vunpack.c.l.b16 %v919
        %v968 = vunpack.c.l.b16 %v920
        %v969 = vunpack.c.l.b16 %v921
        %v970 = vunpack.c.l.b16 %v922
        %v971 = vunpack.c.l.b16 %v923
        %v972 = vunpack.c.l.b16 %v924
        %v973 = vunpack.c.l.b16 %v925
        %v974 = vunpack.c.l.b16 %v926
        %v975 = vunpack.c.l.b16 %v927
        %v976 = vunpack.c.l.b16 %v928
        %v977 = vpack.c.b16 %v954, %v953
        %v978 = vpack.c.b16 %v956, %v955
        %v979 = vpack.c.b16 %v958, %v957
        %v980 = vpack.c.b16 %v960, %v959
        %v981 = vpack.c.b16 %v962, %v961
        %v982 = vpack.c.b16 %v964, %v963
        %v983 = vpack.c.b16 %v966, %v965
        %v984 = vpack.c.b16 %v968, %v967
        %v985 = vpack.c.b16 %v970, %v969
        %v986 = vpack.c.b16 %v972, %v971
        %v987 = vpack.c.b16 %v974, %v973
        %v988 = vpack.c.b16 %v976, %v975
        %v1002 = vsel %vm438, %v903, 0
        %1004 = vmatpush.bf16.msra.mxu0 %v984
        %1005 = vmatpush.bf16.msra.mxu0 %v983
        %1006 = vmatpush.bf16.msra.mxu0 %v982
        %1007 = vmatpush.bf16.msra.mxu0 %v981
        %1008 = vmatpush.bf16.msra.mxu0 %v980
        %1009 = vmatpush.bf16.msra.mxu0 %v979
        %1010 = vmatpush.bf16.msra.mxu0 %v978
        %1011 = vmatpush.bf16.msra.mxu0 %v977
        %1012 = vmatmul.bf16.gmra.mxu0 %v902
        %v1013 = vpop.f32.mrf.mxu0
        %v1014 = vadd.f32 0.0, %v1013
        %v1015 = vpop.f32.mrf.mxu0
        %1016 = vdwg.mxu0
        %1017 = vmatpush.bf16.msra.mxu0 0
        %1018 = vmatpush.bf16.msra.mxu0 0
        %1019 = vmatpush.bf16.msra.mxu0 0
        %1020 = vmatpush.bf16.msra.mxu0 0
        %1021 = vmatpush.bf16.msra.mxu0 %v988
        %1022 = vmatpush.bf16.msra.mxu0 %v987
        %1023 = vmatpush.bf16.msra.mxu0 %v986
        %1024 = vmatpush.bf16.msra.mxu0 %v985
        %1025 = vmatmul.bf16.gmra.mxu0 %v1002
        %v1026 = vpop.f32.mrf.mxu0
        %v1027 = vadd.f32 %v1014, %v1026
        %v1028 = vpop.f32.mrf.mxu0
        %1029 = vdwg.mxu0
        %v1030 = vadd.f32 %v629, %v1027
        %v1031 = vld [vmem:[%s6] sm:$0x1]
        %v1033 = vperm.slane %v1031, 0
        %v1035 = vadd.f32 %v1030, %v1033
        %1036 = vst [vmem:[%s378] sm:$0xff] %v1035
        %s1037 = sand.u32 %s187, 1
        %s1038 = scalar_lea.sflag [#allocation4], %s1037
        %s1039 = sand.u32 %s187, 1
        %s1040 = smul.addr %s1039, 8
        %s1041 = scalar_lea.vmem [#allocation13], %s1040
        // Predicated region
        $region73: #{tpu_custom_call.1} parent=47 // pred_check
          %p1042 = pneg %p197
        $region74: #{tpu_custom_call.1} parent=47 // pred_check_branch
          %1044 = sbr.rel (%p1042) target = $region76
        $region75: #{tpu_custom_call.1} parent=47 // pred_region
          %1046 = vsyncadd %s1038, 0
          %s1047 = smul.addr %s27, 8
          %s1048 = scalar_lea.hbm %s7, %s1047
          %s1050 = sshll.u32 %s1041, 4
          %s1051 = int_to_ptr.vmem [resolvable:$true] %s1050
          %s1052 = sshll.u32 %s1048, 4
          %s1053 = int_to_ptr.hbm [resolvable:$true] %s1052
          %1055 = dma.vmem_to_hbm [thread:$0]  %s1051, 128, %s1053, %s1038
        $region76: #{tpu_custom_call.1} parent=47 // pred_fallthru
          _
      $region48: #{tpu_custom_call.1} parent=5 // pred_fallthru
        _
      %p1056 = scmp.le.s32.totalorder 2, %s22
      // Predicated region
      $region77: #{tpu_custom_call.1} parent=5 // pred_check
        %p1057 = pneg %p1056
      $region78: #{tpu_custom_call.1} parent=5 // pred_check_branch
        %1059 = sbr.rel (%p1057) target = $region80
      $region79: #{tpu_custom_call.1} parent=5 // pred_region
        %s1060 = ssub.s32 %s22, 2
        // Predicated region
        $region81: #{tpu_custom_call.1} parent=79 // pred_check
          %p1061 = pneg %p203
        $region82: #{tpu_custom_call.1} parent=79 // pred_check_branch
          %1063 = sbr.rel (%p1061) target = $region84
        $region83: #{tpu_custom_call.1} parent=79 // pred_region
          %s1064 = sand.u32 %s188, 1
          %s1065 = scalar_lea.sflag [#allocation4], %s1064
          %s1066 = sand.u32 %s188, 1
          %s1067 = smul.addr %s1066, 8
          %s1068 = scalar_lea.vmem [#allocation13], %s1067
          %1070 = dma.done %s1065, 128
        $region84: #{tpu_custom_call.1} parent=79 // pred_fallthru
          _
      $region80: #{tpu_custom_call.1} parent=5 // pred_fallthru
        _
    $region6: #{tpu_custom_call.1} parent=1 // loop_footer
      %s26 = sadd.s32 1, %s22
    $region7: #{tpu_custom_call.1} parent=1 // loop_footer_branch
      %21 = sbr.rel target = $region3
    $region8: #{tpu_custom_call.1} parent=1 // loop_exit
      _
    %1071 = vsyncpa [#allocation3], 1
    %s1072 = scalar_lea.sflag [#allocation3], 1
    %1073 = vsyncpa %s1072, 1
    %1074 = vsyncpa [#allocation6], 1
    %1075 = vsyncpa [#allocation9], 1
    %1076 = vsyncpa [#allocation12], 1
    %1077 = vsyncpa [#allocation4], 1
    %s1078 = scalar_lea.sflag [#allocation4], 1
    %1079 = vsyncpa %s1078, 1

</llo_original>
